<compile_context>
chip_gen: v5e
topology: v5e:2x2
jax: 0.10.0
libtpu: 0.0.40
codegen_flags: <defaults>
</compile_context>

<pallas_src>
import jax
import jax.numpy as jnp
from jax.experimental import pallas as pl
from jax.experimental.pallas import tpu as pltpu


def _round_up(x, m):
    return ((x + m - 1) // m) * m


def weight_norm_effective(v, g):
    """torch.nn.utils.weight_norm: w = g * v / ||v|| (norm over all dims but 0)."""
    norm = jnp.sqrt(jnp.sum(v * v, axis=(1, 2), keepdims=True))
    return g[:, None, None] * v / norm


def _build_kernel(*, ksize, dilation, cout_p, has_conv, has_downsample,
                  compute_dtype):
    """Fused TemporalBlock kernel body (all sizes static via closure).

    Row layout per batch element: [pad_t causal-zero rows | L real rows |
    alignment rows].  A dilated causal tap x[t - s] is the whole row block
    rolled down by s (wrap-around only ever lands on masked/discarded rows).
    """
    shifts = [(ksize - 1 - k) * dilation for k in range(ksize)]  # shifts[-1] == 0
    nz_shifts = shifts[:-1]                                      # taps k = 0..K-2

    def kernel(*refs):
        i = 0
        x_ref = refs[i]; i += 1
        if has_conv:
            mask_ref = refs[i]; i += 1
            w1z_ref, b1z_ref, w1r_ref, w2_ref, b2_ref = refs[i:i + 5]; i += 5
        elif has_downsample:
            wd_ref, bd_ref = refs[i:i + 2]; i += 2
        o_ref = refs[i]

        x = x_ref[...]

        if not has_conv:
            # PyTorch forward() short-circuits to the (downsampled) residual
            # when kernel_size == 1 (no convs, no final relu).
            if has_downsample:
                out = (jnp.dot(x.astype(compute_dtype), wd_ref[...],
                               preferred_element_type=jnp.float32) + bd_ref[...])
            else:
                out = x
            o_ref[...] = out.astype(o_ref.dtype)
            return

        # f32 view is used for sublane rolls (safe lowering); the bf16 view
        # feeds the MXU.  roll(f32).astype(bf16) == roll(astype(bf16)).
        xf = x.astype(jnp.float32)
        xc = x.astype(compute_dtype)

        # ---- conv1 (+ fused downsample columns on the shift-0 tap) ---------
        acc = jnp.dot(xc, w1z_ref[...],
                      preferred_element_type=jnp.float32) + b1z_ref[...]
        if has_downsample:
            res = acc[:, cout_p:]          # 1x1 downsample residual (pre-relu)
            acc = acc[:, :cout_p]
        else:
            res = xf                       # exact f32 identity residual
        for k, s in enumerate(nz_shifts):
            acc = acc + jnp.dot(
                pltpu.roll(xf, shift=s, axis=0).astype(compute_dtype),
                w1r_ref[k], preferred_element_type=jnp.float32)

        # ReLU, then zero the causal-pad rows so conv2 sees the implicit zero
        # padding (single broadcast multiply with a resident (rows, 1) mask).
        # TODO(synk): dropout1/dropout2 are identity (inference semantics).
        h1 = jnp.maximum(acc, 0.0) * mask_ref[...]
        h1c = h1.astype(compute_dtype)

        # ---- conv2: same accumulated-dots structure -------------------------
        acc2 = jnp.dot(h1c, w2_ref[ksize - 1],
                       preferred_element_type=jnp.float32) + b2_ref[...]
        for k, s in enumerate(nz_shifts):
            acc2 = acc2 + jnp.dot(
                pltpu.roll(h1, shift=s, axis=0).astype(compute_dtype),
                w2_ref[k], preferred_element_type=jnp.float32)

        out = jnp.maximum(jnp.maximum(acc2, 0.0) + res, 0.0)
        o_ref[...] = out.astype(o_ref.dtype)

    return kernel


def temporal_block_forward(x_ncl, params, *, n_inputs, n_outputs, kernel_size,
                           stride, dilation, padding,
                           compute_dtype=jnp.bfloat16,
                           out_dtype=jnp.float32,
                           batch_tile=None):
    """TemporalBlock forward on TPU.  x_ncl: (N, C_in, L) -> (N, C_out, L)."""
    assert stride == 1  # TODO(synk): stride != 1 unsupported (Chomp1d math assumes stride=1)
    has_conv = kernel_size != 1
    has_downsample = n_inputs != n_outputs
    pad_t = (kernel_size - 1) * dilation if has_conv else 0
    if has_conv:
        assert padding == pad_t, "TemporalBlock is used with padding=(K-1)*dilation"

    x = jnp.transpose(x_ncl, (0, 2, 1)).astype(jnp.float32)   # (N, L, Cin)
    N, L, cin = x.shape
    cout = n_outputs
    K = kernel_size

    # Lane-dense channel padding.
    cin_p = _round_up(cin, 128)
    cout_p = _round_up(cout, 128)
    cout_z = 2 * cout_p if (has_conv and has_downsample) else cout_p

    # Exact f32 input only when the residual is the identity; otherwise bf16
    # HBM storage halves the input DMA (MXU operands are bf16 either way).
    store_dtype = jnp.float32 if not has_downsample else compute_dtype
    store_isz = jnp.dtype(store_dtype).itemsize
    out_isz = jnp.dtype(out_dtype).itemsize
    sub = 16 if store_isz == 2 else 8

    # Per element: [pad_t causal zeros | L real rows | alignment zeros].
    lp = _round_up(L + pad_t, sub)

    def vmem_bytes(bt):
        r = bt * lp
        io = 2 * r * cin_p * store_isz + 2 * r * cout_p * out_isz  # double-buffered I/O
        tmp = r * (cin_p * (4 + 2 + 2) + cout_z * 4 + cout_p * (4 + 4 + 2 + 4))
        w = 4 * (K * cin_p * cout_p + K * cout_p * cout_p + cin_p * cout_p + 4 * cout_p)
        return io + tmp + w

    if batch_tile is None:
        target_rows = 1024                       # amortize ~0.35us/step overhead
        batch_tile = max(1, target_rows // lp)
        batch_tile = min(batch_tile, N)
        if N >= 2:
            # >= 2 grid steps so the "parallel" axis feeds both v7x TensorCores.
            batch_tile = min(batch_tile, -(-N // 2))
        while batch_tile > 1 and vmem_bytes(batch_tile) > (20 << 20):
            batch_tile -= 1
        # Prefer a divisor of N (no dummy padded elements) unless that would
        # shrink the tile by more than 2x.
        d = batch_tile
        while d > 1 and N % d:
            d -= 1
        if 2 * d >= batch_tile:
            batch_tile = d
    batch_tile = max(1, min(batch_tile, N))

    n_pad = _round_up(N, batch_tile)
    rows_per_step = batch_tile * lp
    n_steps = n_pad // batch_tile

    # Pre-pad in the wrapper so the kernel only needs rolls.
    # TODO(synk): for a stack of TemporalBlocks, keep this padded channels-last
    # rows layout persistent between blocks; the NCL transpose/pad here and the
    # slice/transpose below dominate HBM traffic for tiny channel counts.
    x_pad = jnp.pad(x, ((0, n_pad - N), (pad_t, lp - L - pad_t), (0, cin_p - cin)))
    x_rows = x_pad.reshape(n_pad * lp, cin_p).astype(store_dtype)

    args = [x_rows]
    in_specs = [pl.BlockSpec((rows_per_step, cin_p), lambda n: (n, 0))]

    if has_conv:
        # (rows, 1) f32 row mask: 0 on each element's causal-pad rows.
        row_mask = jnp.tile(
            (jnp.arange(lp, dtype=jnp.float32) >= pad_t)[:, None], (batch_tile, 1))

        w1 = weight_norm_effective(params["w1_v"].astype(jnp.float32),
                                   params["w1_g"].astype(jnp.float32))  # (cout,cin,K)
        w2 = weight_norm_effective(params["w2_v"].astype(jnp.float32),
                                   params["w2_g"].astype(jnp.float32))  # (cout,cout,K)
        # Per-tap (Cin_p, Cout_p) blocks; tap k has causal shift (K-1-k)*dilation.
        w1_taps = jnp.pad(jnp.transpose(w1, (2, 1, 0)),
                          ((0, 0), (0, cin_p - cin), (0, cout_p - cout)))
        w2_taps = jnp.pad(jnp.transpose(w2, (2, 1, 0)),
                          ((0, 0), (0, cout_p - cout), (0, cout_p - cout)))
        b1 = jnp.pad(params["b1"].astype(jnp.float32), (0, cout_p - cout))
        b2 = jnp.pad(params["b2"].astype(jnp.float32), (0, cout_p - cout)).reshape(1, cout_p)

        w1z = w1_taps[K - 1]                       # shift-0 tap
        b1z = b1
        if has_downsample:
            wd = jnp.pad(jnp.transpose(params["wd"][:, :, 0].astype(jnp.float32), (1, 0)),
                         ((0, cin_p - cin), (0, cout_p - cout)))
            bd = jnp.pad(params["bd"].astype(jnp.float32), (0, cout_p - cout))
            # Fuse the 1x1 downsample as extra output columns of the shift-0 tap.
            w1z = jnp.concatenate([w1z, wd], axis=1)      # (cin_p, 2*cout_p)
            b1z = jnp.concatenate([b1z, bd], axis=0)
        w1z = w1z.astype(compute_dtype)
        b1z = b1z.reshape(1, cout_z)
        w1r = w1_taps[:K - 1].astype(compute_dtype)        # (K-1, cin_p, cout_p)
        w2p = w2_taps.astype(compute_dtype)                # (K, cout_p, cout_p)

        args += [row_mask, w1z, b1z, w1r, w2p, b2]
        # Constant index_maps: fetched once, resident in VMEM across grid steps.
        in_specs += [
            pl.BlockSpec((rows_per_step, 1), lambda n: (0, 0)),
            pl.BlockSpec((cin_p, cout_z), lambda n: (0, 0)),
            pl.BlockSpec((1, cout_z), lambda n: (0, 0)),
            pl.BlockSpec((K - 1, cin_p, cout_p), lambda n: (0, 0, 0)),
            pl.BlockSpec((K, cout_p, cout_p), lambda n: (0, 0, 0)),
            pl.BlockSpec((1, cout_p), lambda n: (0, 0)),
        ]
    elif has_downsample:
        wd = jnp.pad(jnp.transpose(params["wd"][:, :, 0].astype(jnp.float32), (1, 0)),
                     ((0, cin_p - cin), (0, cout_p - cout))).astype(compute_dtype)
        bd = jnp.pad(params["bd"].astype(jnp.float32), (0, cout_p - cout)).reshape(1, cout_p)
        args += [wd, bd]
        in_specs += [
            pl.BlockSpec((cin_p, cout_p), lambda n: (0, 0)),
            pl.BlockSpec((1, cout_p), lambda n: (0, 0)),
        ]

    kernel = _build_kernel(ksize=K, dilation=dilation, cout_p=cout_p,
                           has_conv=has_conv, has_downsample=has_downsample,
                           compute_dtype=compute_dtype)

    vmem_limit = int(min(48 << 20, max(24 << 20, 2 * vmem_bytes(batch_tile))))

    out_rows = pl.pallas_call(
        kernel,
        out_shape=jax.ShapeDtypeStruct((n_pad * lp, cout_p), out_dtype),
        grid=(n_steps,),
        in_specs=in_specs,
        out_specs=pl.BlockSpec((rows_per_step, cout_p), lambda n: (n, 0)),
        compiler_params=pltpu.CompilerParams(
            dimension_semantics=("parallel",),
            vmem_limit_bytes=vmem_limit),
    )(*args)

    out = out_rows.reshape(n_pad, lp, cout_p)[:N, pad_t:pad_t + L, :cout]
    return jnp.transpose(out, (0, 2, 1))  # back to (N, Cout, L)


# ---------------- pure-JAX reference (same math + same bf16 casts) -----------
def _ref_causal_conv(x_nlc, w_kco, b, dilation):
    n, length, _ = x_nlc.shape
    k = w_kco.shape[0]
    acc = jnp.zeros((n, length, w_kco.shape[2]), jnp.float32) + b.reshape(1, 1, -1)
    for i in range(k):
        s = (k - 1 - i) * dilation
        xs = jnp.pad(x_nlc, ((0, 0), (s, 0), (0, 0)))[:, :length, :]
        acc = acc + jnp.einsum("nlc,cd->nld", xs, w_kco[i],
                               preferred_element_type=jnp.float32)
    return acc


def temporal_block_reference(x_ncl, params, *, n_inputs, n_outputs, kernel_size,
                             dilation, compute_dtype=jnp.bfloat16):
    x = jnp.transpose(x_ncl, (0, 2, 1)).astype(jnp.float32)
    xc = x.astype(compute_dtype)
    if n_inputs != n_outputs:
        wd = jnp.transpose(params["wd"][:, :, 0].astype(jnp.float32), (1, 0)).astype(compute_dtype)
        res = jnp.einsum("nlc,cd->nld", xc, wd, preferred_element_type=jnp.float32)
        res = res + params["bd"].astype(jnp.float32).reshape(1, 1, -1)
    else:
        res = x
    if kernel_size != 1:
        w1 = weight_norm_effective(params["w1_v"].astype(jnp.float32),
                                   params["w1_g"].astype(jnp.float32))
        w2 = weight_norm_effective(params["w2_v"].astype(jnp.float32),
                                   params["w2_g"].astype(jnp.float32))
        w1k = jnp.transpose(w1, (2, 1, 0)).astype(compute_dtype)
        w2k = jnp.transpose(w2, (2, 1, 0)).astype(compute_dtype)
        h1 = jnp.maximum(
            _ref_causal_conv(xc, w1k, params["b1"].astype(jnp.float32), dilation), 0.0)
        h2 = jnp.maximum(
            _ref_causal_conv(h1.astype(compute_dtype), w2k,
                             params["b2"].astype(jnp.float32), dilation), 0.0)
        out = jnp.maximum(h2 + res, 0.0)
    else:
        out = res
    return jnp.transpose(out, (0, 2, 1))


if __name__ == "__main__":
    def make_params(key, cin, cout, K):
        ks = jax.random.split(key, 8)
        return {
            "w1_v": 0.01 * jax.random.normal(ks[0], (cout, cin, K), jnp.float32),
            "w1_g": 0.5 + jax.random.uniform(ks[1], (cout,), jnp.float32),
            "b1": 0.01 * jax.random.normal(ks[2], (cout,), jnp.float32),
            "w2_v": 0.01 * jax.random.normal(ks[3], (cout, cout, K), jnp.float32),
            "w2_g": 0.5 + jax.random.uniform(ks[4], (cout,), jnp.float32),
            "b2": 0.01 * jax.random.normal(ks[5], (cout,), jnp.float32),
            "wd": 0.01 * jax.random.normal(ks[6], (cout, cin, 1), jnp.float32),
            "bd": 0.01 * jax.random.normal(ks[7], (cout,), jnp.float32),
        }

    key = jax.random.PRNGKey(0)
    cases = [
        # (name,                      N, cin, cout, K, dilation, L)
        ("downsample_k3_d1",          2, 4,   8,    3, 1,        16),
        ("identity_k3_d2_batchtile3", 5, 8,   8,    3, 2,        20),
        ("kernel_size_1_downsample",  2, 4,   8,    1, 1,        16),
    ]
    for name, N, cin, cout, K, dil, L in cases:
        key, kp, kx = jax.random.split(key, 3)
        params = make_params(kp, cin, cout, K)
        x = jax.random.normal(kx, (N, cin, L), jnp.float32)
        pad = (K - 1) * dil

        out = temporal_block_forward(
            x, params, n_inputs=cin, n_outputs=cout, kernel_size=K,
            stride=1, dilation=dil, padding=pad)
        out = jax.block_until_ready(out)

        ref = temporal_block_reference(
            x, params, n_inputs=cin, n_outputs=cout, kernel_size=K, dilation=dil)
        ref = jax.block_until_ready(ref)

        assert out.shape == (N, cout, L), (name, out.shape)
        err = float(jnp.max(jnp.abs(out - ref)))
        tol = 1e-4 + 1e-3 * float(jnp.max(jnp.abs(ref)))   # abs + relative
        assert err < tol, (name, err, tol)

    print("KERNEL_OK")
</pallas_src>

<mosaic_0001>
module attributes {stable_mosaic.version = 11 : i64} {
  func.func @kernel(%arg0: i32, %arg1: memref<32x128xbf16, #tpu.memory_space<vmem>>, %arg2: memref<32x1xi32, #tpu.memory_space<vmem>>, %arg3: memref<128x256xbf16, #tpu.memory_space<vmem>>, %arg4: memref<1x256xf32, #tpu.memory_space<vmem>>, %arg5: memref<2x128x128xbf16, #tpu.memory_space<vmem>>, %arg6: memref<3x128x128xbf16, #tpu.memory_space<vmem>>, %arg7: memref<1x128xf32, #tpu.memory_space<vmem>>, %arg8: memref<32x128xf32, #tpu.memory_space<vmem>>) attributes {dimension_semantics = [#tpu.dimension_semantics<parallel>], iteration_bounds = array<i64: 2>, scalar_prefetch = 0 : i64, scratch_operands = 0 : i64, tpu.core_type = #tpu.core_type<tc>, window_params = [{transform_indices = @transform_0, window_bounds = array<i64: 32, 128>}, {pipeline_mode = #tpu.pipeline_mode<synchronous>, transform_indices = @transform_1, window_bounds = array<i64: 32, 1>}, {pipeline_mode = #tpu.pipeline_mode<synchronous>, transform_indices = @transform_2, window_bounds = array<i64: 128, 256>}, {pipeline_mode = #tpu.pipeline_mode<synchronous>, transform_indices = @transform_3, window_bounds = array<i64: 1, 256>}, {pipeline_mode = #tpu.pipeline_mode<synchronous>, transform_indices = @transform_4, window_bounds = array<i64: 2, 128, 128>}, {pipeline_mode = #tpu.pipeline_mode<synchronous>, transform_indices = @transform_5, window_bounds = array<i64: 3, 128, 128>}, {pipeline_mode = #tpu.pipeline_mode<synchronous>, transform_indices = @transform_6, window_bounds = array<i64: 1, 128>}, {transform_indices = @transform_7, window_bounds = array<i64: 32, 128>}]} {
    %c0 = arith.constant 0 : index
    %c0_0 = arith.constant 0 : index
    %0 = vector.load %arg1[%c0, %c0_0] : memref<32x128xbf16, #tpu.memory_space<vmem>>, vector<32x128xbf16>
    %1 = arith.extf %0 : vector<32x128xbf16> to vector<32x128xf32>
    %c0_1 = arith.constant 0 : index
    %c0_2 = arith.constant 0 : index
    %2 = vector.load %arg3[%c0_1, %c0_2] : memref<128x256xbf16, #tpu.memory_space<vmem>>, vector<128x256xbf16>
    %cst = arith.constant dense<0.000000e+00> : vector<32x256xf32>
    %3 = tpu.matmul %0, %2, %cst {dimension_numbers = #tpu.dot_dimension_numbers<[1], [0], [0], [1], [0, 0, 1, 1], [], []>} : vector<32x128xbf16>, vector<128x256xbf16>, vector<32x256xf32> -> vector<32x256xf32>
    %c0_3 = arith.constant 0 : index
    %c0_4 = arith.constant 0 : index
    %4 = vector.load %arg4[%c0_3, %c0_4] : memref<1x256xf32, #tpu.memory_space<vmem>>, vector<1x256xf32>
    %5 = vector.broadcast %4 : vector<1x256xf32> to vector<32x256xf32>
    %6 = arith.addf %3, %5 : vector<32x256xf32>
    %7 = vector.extract_strided_slice %6 {offsets = [0, 128], sizes = [32, 128], strides = [1, 1]} : vector<32x256xf32> to vector<32x128xf32>
    %8 = vector.extract_strided_slice %6 {offsets = [0, 0], sizes = [32, 128], strides = [1, 1]} : vector<32x256xf32> to vector<32x128xf32>
    %c2_i32 = arith.constant 2 : i32
    %9 = tpu.dynamic_rotate %1 by %c2_i32 dim 0 : vector<32x128xf32>, i32 -> vector<32x128xf32>
    %10 = arith.truncf %9 : vector<32x128xf32> to vector<32x128xbf16>
    %c0_5 = arith.constant 0 : index
    %c0_6 = arith.constant 0 : index
    %c0_7 = arith.constant 0 : index
    %11 = vector.load %arg5[%c0_5, %c0_6, %c0_7] : memref<2x128x128xbf16, #tpu.memory_space<vmem>>, vector<1x128x128xbf16>
    %12 = vector.shape_cast %11 : vector<1x128x128xbf16> to vector<128x128xbf16>
    %cst_8 = arith.constant dense<0.000000e+00> : vector<32x128xf32>
    %13 = tpu.matmul %10, %12, %cst_8 {dimension_numbers = #tpu.dot_dimension_numbers<[1], [0], [0], [1], [0, 0, 1, 1], [], []>} : vector<32x128xbf16>, vector<128x128xbf16>, vector<32x128xf32> -> vector<32x128xf32>
    %14 = arith.addf %8, %13 : vector<32x128xf32>
    %c1_i32 = arith.constant 1 : i32
    %15 = tpu.dynamic_rotate %1 by %c1_i32 dim 0 : vector<32x128xf32>, i32 -> vector<32x128xf32>
    %16 = arith.truncf %15 : vector<32x128xf32> to vector<32x128xbf16>
    %c1 = arith.constant 1 : index
    %c0_9 = arith.constant 0 : index
    %c0_10 = arith.constant 0 : index
    %17 = vector.load %arg5[%c1, %c0_9, %c0_10] : memref<2x128x128xbf16, #tpu.memory_space<vmem>>, vector<1x128x128xbf16>
    %18 = vector.shape_cast %17 : vector<1x128x128xbf16> to vector<128x128xbf16>
    %cst_11 = arith.constant dense<0.000000e+00> : vector<32x128xf32>
    %19 = tpu.matmul %16, %18, %cst_11 {dimension_numbers = #tpu.dot_dimension_numbers<[1], [0], [0], [1], [0, 0, 1, 1], [], []>} : vector<32x128xbf16>, vector<128x128xbf16>, vector<32x128xf32> -> vector<32x128xf32>
    %20 = arith.addf %14, %19 : vector<32x128xf32>
    %cst_12 = arith.constant 0.000000e+00 : f32
    %21 = vector.broadcast %cst_12 : f32 to vector<32x128xf32>
    %22 = arith.maximumf %20, %21 : vector<32x128xf32>
    %c0_13 = arith.constant 0 : index
    %c0_14 = arith.constant 0 : index
    %23 = vector.load %arg2[%c0_13, %c0_14] : memref<32x1xi32, #tpu.memory_space<vmem>>, vector<32x1xi32>
    %cst_15 = arith.constant dense<0> : vector<32x1xi32>
    %24 = arith.cmpi ne, %23, %cst_15 : vector<32x1xi32>
    %25 = arith.extui %24 : vector<32x1xi1> to vector<32x1xi32>
    %26 = arith.sitofp %25 : vector<32x1xi32> to vector<32x1xf32>
    %27 = vector.broadcast %26 : vector<32x1xf32> to vector<32x128xf32>
    %28 = arith.mulf %22, %27 : vector<32x128xf32>
    %29 = arith.truncf %28 : vector<32x128xf32> to vector<32x128xbf16>
    %c2 = arith.constant 2 : index
    %c0_16 = arith.constant 0 : index
    %c0_17 = arith.constant 0 : index
    %30 = vector.load %arg6[%c2, %c0_16, %c0_17] : memref<3x128x128xbf16, #tpu.memory_space<vmem>>, vector<1x128x128xbf16>
    %31 = vector.shape_cast %30 : vector<1x128x128xbf16> to vector<128x128xbf16>
    %cst_18 = arith.constant dense<0.000000e+00> : vector<32x128xf32>
    %32 = tpu.matmul %29, %31, %cst_18 {dimension_numbers = #tpu.dot_dimension_numbers<[1], [0], [0], [1], [0, 0, 1, 1], [], []>} : vector<32x128xbf16>, vector<128x128xbf16>, vector<32x128xf32> -> vector<32x128xf32>
    %c0_19 = arith.constant 0 : index
    %c0_20 = arith.constant 0 : index
    %33 = vector.load %arg7[%c0_19, %c0_20] : memref<1x128xf32, #tpu.memory_space<vmem>>, vector<1x128xf32>
    %34 = vector.broadcast %33 : vector<1x128xf32> to vector<32x128xf32>
    %35 = arith.addf %32, %34 : vector<32x128xf32>
    %c2_i32_21 = arith.constant 2 : i32
    %36 = tpu.dynamic_rotate %28 by %c2_i32_21 dim 0 : vector<32x128xf32>, i32 -> vector<32x128xf32>
    %37 = arith.truncf %36 : vector<32x128xf32> to vector<32x128xbf16>
    %c0_22 = arith.constant 0 : index
    %c0_23 = arith.constant 0 : index
    %c0_24 = arith.constant 0 : index
    %38 = vector.load %arg6[%c0_22, %c0_23, %c0_24] : memref<3x128x128xbf16, #tpu.memory_space<vmem>>, vector<1x128x128xbf16>
    %39 = vector.shape_cast %38 : vector<1x128x128xbf16> to vector<128x128xbf16>
    %cst_25 = arith.constant dense<0.000000e+00> : vector<32x128xf32>
    %40 = tpu.matmul %37, %39, %cst_25 {dimension_numbers = #tpu.dot_dimension_numbers<[1], [0], [0], [1], [0, 0, 1, 1], [], []>} : vector<32x128xbf16>, vector<128x128xbf16>, vector<32x128xf32> -> vector<32x128xf32>
    %41 = arith.addf %35, %40 : vector<32x128xf32>
    %c1_i32_26 = arith.constant 1 : i32
    %42 = tpu.dynamic_rotate %28 by %c1_i32_26 dim 0 : vector<32x128xf32>, i32 -> vector<32x128xf32>
    %43 = arith.truncf %42 : vector<32x128xf32> to vector<32x128xbf16>
    %c1_27 = arith.constant 1 : index
    %c0_28 = arith.constant 0 : index
    %c0_29 = arith.constant 0 : index
    %44 = vector.load %arg6[%c1_27, %c0_28, %c0_29] : memref<3x128x128xbf16, #tpu.memory_space<vmem>>, vector<1x128x128xbf16>
    %45 = vector.shape_cast %44 : vector<1x128x128xbf16> to vector<128x128xbf16>
    %cst_30 = arith.constant dense<0.000000e+00> : vector<32x128xf32>
    %46 = tpu.matmul %43, %45, %cst_30 {dimension_numbers = #tpu.dot_dimension_numbers<[1], [0], [0], [1], [0, 0, 1, 1], [], []>} : vector<32x128xbf16>, vector<128x128xbf16>, vector<32x128xf32> -> vector<32x128xf32>
    %47 = arith.addf %41, %46 : vector<32x128xf32>
    %cst_31 = arith.constant 0.000000e+00 : f32
    %48 = vector.broadcast %cst_31 : f32 to vector<32x128xf32>
    %49 = arith.maximumf %47, %48 : vector<32x128xf32>
    %50 = arith.addf %49, %7 : vector<32x128xf32>
    %cst_32 = arith.constant 0.000000e+00 : f32
    %51 = vector.broadcast %cst_32 : f32 to vector<32x128xf32>
    %52 = arith.maximumf %50, %51 : vector<32x128xf32>
    %c0_33 = arith.constant 0 : index
    %c0_34 = arith.constant 0 : index
    %53 = vector.load %arg8[%c0_33, %c0_34] : memref<32x128xf32, #tpu.memory_space<vmem>>, vector<32x128xf32>
    tpu.vector_store %arg8[%c0_33, %c0_34], %52 {strides = array<i32>} : memref<32x128xf32, #tpu.memory_space<vmem>>, vector<32x128xf32>,
    return
  }
  func.func @transform_0(%arg0: i32) -> (i32, i32) {
    %c0_i32 = arith.constant 0 : i32
    %c0_i32_0 = arith.constant 0 : i32
    return %arg0, %c0_i32 : i32, i32
  }
  func.func @transform_1(%arg0: i32) -> (i32, i32) {
    %c0_i32 = arith.constant 0 : i32
    %c0_i32_0 = arith.constant 0 : i32
    %c0_i32_1 = arith.constant 0 : i32
    return %c0_i32, %c0_i32_0 : i32, i32
  }
  func.func @transform_2(%arg0: i32) -> (i32, i32) {
    %c0_i32 = arith.constant 0 : i32
    %c0_i32_0 = arith.constant 0 : i32
    %c0_i32_1 = arith.constant 0 : i32
    return %c0_i32, %c0_i32_0 : i32, i32
  }
  func.func @transform_3(%arg0: i32) -> (i32, i32) {
    %c0_i32 = arith.constant 0 : i32
    %c0_i32_0 = arith.constant 0 : i32
    %c0_i32_1 = arith.constant 0 : i32
    return %c0_i32, %c0_i32_0 : i32, i32
  }
  func.func @transform_4(%arg0: i32) -> (i32, i32, i32) {
    %c0_i32 = arith.constant 0 : i32
    %c0_i32_0 = arith.constant 0 : i32
    %c0_i32_1 = arith.constant 0 : i32
    %c0_i32_2 = arith.constant 0 : i32
    return %c0_i32, %c0_i32_0, %c0_i32_1 : i32, i32, i32
  }
  func.func @transform_5(%arg0: i32) -> (i32, i32, i32) {
    %c0_i32 = arith.constant 0 : i32
    %c0_i32_0 = arith.constant 0 : i32
    %c0_i32_1 = arith.constant 0 : i32
    %c0_i32_2 = arith.constant 0 : i32
    return %c0_i32, %c0_i32_0, %c0_i32_1 : i32, i32, i32
  }
  func.func @transform_6(%arg0: i32) -> (i32, i32) {
    %c0_i32 = arith.constant 0 : i32
    %c0_i32_0 = arith.constant 0 : i32
    %c0_i32_1 = arith.constant 0 : i32
    return %c0_i32, %c0_i32_0 : i32, i32
  }
  func.func @transform_7(%arg0: i32) -> (i32, i32) {
    %c0_i32 = arith.constant 0 : i32
    %c0_i32_0 = arith.constant 0 : i32
    return %arg0, %c0_i32 : i32, i32
  }
}

</mosaic_0001>

<llo_original>
// kernel: tpu_custom_call.1
$region0: #{tpu_custom_call.1}
  #allocation0 [shape = 'u32[]', space=smem, size = 0x4, offset = 0x4, fixed_abs, tag = 'smem constant byte address 0x4 - core index']
  #allocation1 [shape = 'u32[72,128]{1,0:T(1,128)}', space=vmem, size = 0x9000, scoped, tag = 'internal scratch']
  %s0 = inlined_call_operand.vmem [shape: bf16[64,128], index: 0, kind: input, shape index: {}]
  %s1 = inlined_call_operand.vmem [shape: s32[32,1], index: 1, kind: input, shape index: {}]
  %s2 = inlined_call_operand.hbm [shape: bf16[128,256], index: 2, kind: input, shape index: {}]
  %s3 = inlined_call_operand.vmem [shape: f32[1,256], index: 3, kind: input, shape index: {}]
  %s4 = inlined_call_operand.hbm [shape: bf16[2,128,128], index: 4, kind: input, shape index: {}]
  %s5 = inlined_call_operand.hbm [shape: bf16[3,128,128], index: 5, kind: input, shape index: {}]
  %s6 = inlined_call_operand.vmem [shape: f32[1,128], index: 6, kind: input, shape index: {}]
  %s7 = inlined_call_operand.hbm [shape: f32[64,128], index: 7, kind: output, shape index: {}]
  %s8 = sld [smem:[#allocation0]]
  $region73: #{tpu_custom_call.1} parent=0
    _
  %s10 = ssub.s32 1, %s8
  %s11 = scalar_select 0, %s10, %s8
  $region1: #{tpu_custom_call.1} parent=0
    #allocation2 [shape = 'u8[65536]{0}', space=vmem, size = 0x10000, scoped, tag = 'input window, operand 2, single buffered']
    #allocation3 [shape = 's32[2]{0}', space=sflag, size = 0x8, scoped, tag = 'scoped memory for tpu_custom_call.1']
    #allocation4 [shape = 's32[2]{0}', space=sflag, size = 0x8, scoped, tag = 'scoped memory for tpu_custom_call.1']
    #allocation5 [shape = 'u8[65536]{0}', space=vmem, size = 0x10000, scoped, tag = 'input window, operand 4, single buffered']
    #allocation6 [shape = 's32[1]{0}', space=sflag, size = 0x4, scoped, tag = 'scoped memory for tpu_custom_call.1']
    #allocation7 [shape = 'u8[98304]{0}', space=vmem, size = 0x18000, scoped, tag = 'input window, operand 5, single buffered']
    #allocation8 [shape = 'u8[32768]{0}', space=vmem, size = 0x8000, scoped, tag = 'output window, operand 0']
    %12 = vsyncpa [#allocation3], 0
    %13 = vsyncpa [#allocation6], 0
    %14 = vsyncpa [#allocation4], 0
    %s15 = scalar_lea.sflag [#allocation4], 1
    %16 = vsyncpa %s15, 0
    loop: start=0, step=1, limit=4
    $region2: #{tpu_custom_call.1} parent=1 // loop_pre_header
      _
    $region3: #{tpu_custom_call.1} parent=1 // loop_header
      %s18 = sphi 0, %s22
      %p19 = scmp.ge.s32.totalorder %s18, 4
      %s28 = sphi 0, %s30
      %s31 = sphi 0, %s28
      %s32 = sphi 0, %s31
      %s48 = sphi 0, %s32
      %s52 = sphi 0, %s52
      %s54 = sphi 0, %s52
      %s55 = sphi 0, %s54
      %s69 = sphi 0, %s55
      %s73 = sphi 0, %s73
      %s75 = sphi 0, %s73
      %s76 = sphi 0, %s75
      %s90 = sphi 0, %s76
      %s94 = sphi 0, %s94
      %s96 = sphi 0, %s94
      %s97 = sphi 0, %s96
      %s111 = sphi 0, %s97
      %s115 = sphi 0, %s115
      %s117 = sphi 0, %s115
      %s118 = sphi 0, %s117
      %s132 = sphi 0, %s118
      %s136 = sphi 0, %s136
      %s138 = sphi 0, %s136
      %s139 = sphi 0, %s138
      %s153 = sphi 0, %s139
      %s157 = sphi 0, %s157
      %s159 = sphi 0, %s157
      %s160 = sphi 0, %s159
      %s174 = sphi 0, %s160
      %s180 = sphi 0, %s182
      %s183 = sphi 0, %s180
      %s184 = sphi 0, %s183
      %s200 = sphi 0, %s184
    $region4: #{tpu_custom_call.1} parent=1 // loop_header_branch
      %21 = sbr.rel (%p19) target = $region8
    $region5: #{tpu_custom_call.1} parent=1 // loop_body
      %s23 = ssub.s32 %s18, 1
      %s24 = ssub.s32 %s18, 2
      %s25 = sadd.s32 %s18, 1
      %s26 = ssub.s32 %s18, %s25
      %p27 = scmp.eq.s32.totalorder %s26, 0
      %s29 = sadd.s32 %s28, 1
      %s30 = scalar_select %p27, %s28, %s29
      %p33 = pneg %p27
      %p34 = scmp.eq.s32.totalorder %s18, 1
      %p35 = por %p33, %p34
      %p36 = scmp.ne.s32.totalorder %s28, %s31
      %p37 = scmp.eq.s32.totalorder %s18, 0
      %p38 = por %p36, %p37
      %p39 = scmp.ne.s32.totalorder %s28, %s31
      %p40 = scmp.eq.s32.totalorder %s23, 1
      %p41 = por %p39, %p40
      %p42 = scmp.ne.s32.totalorder %s31, %s32
      %p43 = scmp.eq.s32.totalorder %s23, 0
      %p44 = por %p42, %p43
      %p45 = scmp.ne.s32.totalorder %s31, %s32
      %p46 = scmp.eq.s32.totalorder %s24, 1
      %p47 = por %p45, %p46
      %p49 = scmp.ne.s32.totalorder %s32, %s48
      %p50 = scmp.eq.s32.totalorder %s24, 0
      %p51 = por %p49, %p50
      %s53 = sadd.s32 %s52, 1
      %p56 = scmp.eq.s32.totalorder %s18, 1
      %p57 = scmp.ne.s32.totalorder %s52, %s54
      %p58 = scmp.eq.s32.totalorder %s18, 0
      %p59 = por %p57, %p58
      %p60 = scmp.ne.s32.totalorder %s52, %s54
      %p61 = scmp.eq.s32.totalorder %s23, 1
      %p62 = por %p60, %p61
      %p63 = scmp.ne.s32.totalorder %s54, %s55
      %p64 = scmp.eq.s32.totalorder %s23, 0
      %p65 = por %p63, %p64
      %p66 = scmp.ne.s32.totalorder %s54, %s55
      %p67 = scmp.eq.s32.totalorder %s24, 1
      %p68 = por %p66, %p67
      %p70 = scmp.ne.s32.totalorder %s55, %s69
      %p71 = scmp.eq.s32.totalorder %s24, 0
      %p72 = por %p70, %p71
      %s74 = sadd.s32 %s73, 1
      %p77 = scmp.eq.s32.totalorder %s18, 1
      %p78 = scmp.ne.s32.totalorder %s73, %s75
      %p79 = scmp.eq.s32.totalorder %s18, 0
      %p80 = por %p78, %p79
      %p81 = scmp.ne.s32.totalorder %s73, %s75
      %p82 = scmp.eq.s32.totalorder %s23, 1
      %p83 = por %p81, %p82
      %p84 = scmp.ne.s32.totalorder %s75, %s76
      %p85 = scmp.eq.s32.totalorder %s23, 0
      %p86 = por %p84, %p85
      %p87 = scmp.ne.s32.totalorder %s75, %s76
      %p88 = scmp.eq.s32.totalorder %s24, 1
      %p89 = por %p87, %p88
      %p91 = scmp.ne.s32.totalorder %s76, %s90
      %p92 = scmp.eq.s32.totalorder %s24, 0
      %p93 = por %p91, %p92
      %s95 = sadd.s32 %s94, 1
      %p98 = scmp.eq.s32.totalorder %s18, 1
      %p99 = scmp.ne.s32.totalorder %s94, %s96
      %p100 = scmp.eq.s32.totalorder %s18, 0
      %p101 = por %p99, %p100
      %p102 = scmp.ne.s32.totalorder %s94, %s96
      %p103 = scmp.eq.s32.totalorder %s23, 1
      %p104 = por %p102, %p103
      %p105 = scmp.ne.s32.totalorder %s96, %s97
      %p106 = scmp.eq.s32.totalorder %s23, 0
      %p107 = por %p105, %p106
      %p108 = scmp.ne.s32.totalorder %s96, %s97
      %p109 = scmp.eq.s32.totalorder %s24, 1
      %p110 = por %p108, %p109
      %p112 = scmp.ne.s32.totalorder %s97, %s111
      %p113 = scmp.eq.s32.totalorder %s24, 0
      %p114 = por %p112, %p113
      %s116 = sadd.s32 %s115, 1
      %p119 = scmp.eq.s32.totalorder %s18, 1
      %p120 = scmp.ne.s32.totalorder %s115, %s117
      %p121 = scmp.eq.s32.totalorder %s18, 0
      %p122 = por %p120, %p121
      %p123 = scmp.ne.s32.totalorder %s115, %s117
      %p124 = scmp.eq.s32.totalorder %s23, 1
      %p125 = por %p123, %p124
      %p126 = scmp.ne.s32.totalorder %s117, %s118
      %p127 = scmp.eq.s32.totalorder %s23, 0
      %p128 = por %p126, %p127
      %p129 = scmp.ne.s32.totalorder %s117, %s118
      %p130 = scmp.eq.s32.totalorder %s24, 1
      %p131 = por %p129, %p130
      %p133 = scmp.ne.s32.totalorder %s118, %s132
      %p134 = scmp.eq.s32.totalorder %s24, 0
      %p135 = por %p133, %p134
      %s137 = sadd.s32 %s136, 1
      %p140 = scmp.eq.s32.totalorder %s18, 1
      %p141 = scmp.ne.s32.totalorder %s136, %s138
      %p142 = scmp.eq.s32.totalorder %s18, 0
      %p143 = por %p141, %p142
      %p144 = scmp.ne.s32.totalorder %s136, %s138
      %p145 = scmp.eq.s32.totalorder %s23, 1
      %p146 = por %p144, %p145
      %p147 = scmp.ne.s32.totalorder %s138, %s139
      %p148 = scmp.eq.s32.totalorder %s23, 0
      %p149 = por %p147, %p148
      %p150 = scmp.ne.s32.totalorder %s138, %s139
      %p151 = scmp.eq.s32.totalorder %s24, 1
      %p152 = por %p150, %p151
      %p154 = scmp.ne.s32.totalorder %s139, %s153
      %p155 = scmp.eq.s32.totalorder %s24, 0
      %p156 = por %p154, %p155
      %s158 = sadd.s32 %s157, 1
      %p161 = scmp.eq.s32.totalorder %s18, 1
      %p162 = scmp.ne.s32.totalorder %s157, %s159
      %p163 = scmp.eq.s32.totalorder %s18, 0
      %p164 = por %p162, %p163
      %p165 = scmp.ne.s32.totalorder %s157, %s159
      %p166 = scmp.eq.s32.totalorder %s23, 1
      %p167 = por %p165, %p166
      %p168 = scmp.ne.s32.totalorder %s159, %s160
      %p169 = scmp.eq.s32.totalorder %s23, 0
      %p170 = por %p168, %p169
      %p171 = scmp.ne.s32.totalorder %s159, %s160
      %p172 = scmp.eq.s32.totalorder %s24, 1
      %p173 = por %p171, %p172
      %p175 = scmp.ne.s32.totalorder %s160, %s174
      %p176 = scmp.eq.s32.totalorder %s24, 0
      %p177 = por %p175, %p176
      %s178 = ssub.s32 %s18, %s25
      %p179 = scmp.eq.s32.totalorder %s178, 0
      %s181 = sadd.s32 %s180, 1
      %s182 = scalar_select %p179, %s180, %s181
      %p185 = pneg %p179
      %p186 = scmp.eq.s32.totalorder %s18, 1
      %p187 = por %p185, %p186
      %p188 = scmp.ne.s32.totalorder %s180, %s183
      %p189 = scmp.eq.s32.totalorder %s18, 0
      %p190 = por %p188, %p189
      %p191 = scmp.ne.s32.totalorder %s180, %s183
      %p192 = scmp.eq.s32.totalorder %s23, 1
      %p193 = por %p191, %p192
      %p194 = scmp.ne.s32.totalorder %s183, %s184
      %p195 = scmp.eq.s32.totalorder %s23, 0
      %p196 = por %p194, %p195
      %p197 = scmp.ne.s32.totalorder %s183, %s184
      %p198 = scmp.eq.s32.totalorder %s24, 1
      %p199 = por %p197, %p198
      %p201 = scmp.ne.s32.totalorder %s184, %s200
      %p202 = scmp.eq.s32.totalorder %s24, 0
      %p203 = por %p201, %p202
      %p204 = scmp.le.s32.totalorder 1, %s18
      %p205 = scmp.lt.s32.totalorder %s18, 3
      %p206 = pnand %p204, %p205
      %p207 = pneg %p206
      // Predicated region
      $region9: #{tpu_custom_call.1} parent=5 // pred_check
        _
      $region10: #{tpu_custom_call.1} parent=5 // pred_check_branch
        %209 = sbr.rel (%p206) target = $region12
      $region11: #{tpu_custom_call.1} parent=5 // pred_region
        %s210 = ssub.s32 %s18, 1
        // Predicated region
        $region13: #{tpu_custom_call.1} parent=11 // pred_check
          %p211 = pneg %p65
        $region14: #{tpu_custom_call.1} parent=11 // pred_check_branch
          %213 = sbr.rel (%p211) target = $region16
        $region15: #{tpu_custom_call.1} parent=11 // pred_region
          _
        $region16: #{tpu_custom_call.1} parent=11 // pred_fallthru
          _
        // Predicated region
        $region17: #{tpu_custom_call.1} parent=11 // pred_check
          %p214 = pneg %p86
        $region18: #{tpu_custom_call.1} parent=11 // pred_check_branch
          %216 = sbr.rel (%p214) target = $region20
        $region19: #{tpu_custom_call.1} parent=11 // pred_region
          %218 = vsyncadd [#allocation3], 0
          %s219 = sshll.u32 %s2, 4
          %s220 = int_to_ptr.hbm [resolvable:$true] %s219
          %s221 = sshll.u32 [#allocation2], 4
          %s222 = int_to_ptr.vmem [resolvable:$true] %s221
          %227 = dma.hbm_to_vmem [thread:$0]  %s220, 2048, %s222, [#allocation3], 128, 128, 8
        $region20: #{tpu_custom_call.1} parent=11 // pred_fallthru
          _
        // Predicated region
        $region21: #{tpu_custom_call.1} parent=11 // pred_check
          %p228 = pneg %p107
        $region22: #{tpu_custom_call.1} parent=11 // pred_check_branch
          %230 = sbr.rel (%p228) target = $region24
        $region23: #{tpu_custom_call.1} parent=11 // pred_region
          _
        $region24: #{tpu_custom_call.1} parent=11 // pred_fallthru
          _
        // Predicated region
        $region25: #{tpu_custom_call.1} parent=11 // pred_check
          %p231 = pneg %p128
        $region26: #{tpu_custom_call.1} parent=11 // pred_check_branch
          %233 = sbr.rel (%p231) target = $region28
        $region27: #{tpu_custom_call.1} parent=11 // pred_region
          %235 = vsyncadd [#allocation6], 0
          %s236 = sshll.u32 %s4, 4
          %s237 = int_to_ptr.hbm [resolvable:$true] %s236
          %s238 = sshll.u32 [#allocation5], 4
          %s239 = int_to_ptr.vmem [resolvable:$true] %s238
          %244 = dma.hbm_to_vmem [thread:$0]  %s237, 2048, %s239, [#allocation6], 64, 64, 4
        $region28: #{tpu_custom_call.1} parent=11 // pred_fallthru
          _
        // Predicated region
        $region29: #{tpu_custom_call.1} parent=11 // pred_check
          %p245 = pneg %p149
        $region30: #{tpu_custom_call.1} parent=11 // pred_check_branch
          %247 = sbr.rel (%p245) target = $region32
        $region31: #{tpu_custom_call.1} parent=11 // pred_region
          %249 = vsyncadd [#allocation6], 0
          %s250 = sshll.u32 %s5, 4
          %s251 = int_to_ptr.hbm [resolvable:$true] %s250
          %s252 = sshll.u32 [#allocation7], 4
          %s253 = int_to_ptr.vmem [resolvable:$true] %s252
          %258 = dma.hbm_to_vmem [thread:$0]  %s251, 3072, %s253, [#allocation6], 64, 64, 4
        $region32: #{tpu_custom_call.1} parent=11 // pred_fallthru
          _
        // Predicated region
        $region33: #{tpu_custom_call.1} parent=11 // pred_check
          %p259 = pneg %p170
        $region34: #{tpu_custom_call.1} parent=11 // pred_check_branch
          %261 = sbr.rel (%p259) target = $region36
        $region35: #{tpu_custom_call.1} parent=11 // pred_region
          _
        $region36: #{tpu_custom_call.1} parent=11 // pred_fallthru
          _
      $region12: #{tpu_custom_call.1} parent=5 // pred_fallthru
        _
      %p262 = scmp.lt.s32.totalorder %s18, 2
      // Predicated region
      $region37: #{tpu_custom_call.1} parent=5 // pred_check
        %p263 = pneg %p262
      $region38: #{tpu_custom_call.1} parent=5 // pred_check_branch
        %265 = sbr.rel (%p263) target = $region40
      $region39: #{tpu_custom_call.1} parent=5 // pred_region
        // Predicated region
        $region41: #{tpu_custom_call.1} parent=39 // pred_check
          %p266 = pneg %p38
        $region42: #{tpu_custom_call.1} parent=39 // pred_check_branch
          %268 = sbr.rel (%p266) target = $region44
        $region43: #{tpu_custom_call.1} parent=39 // pred_region
          %s269 = smul.u32 4, %s18
          %p270 = scmp.lt.s32.totalorder %s269, 7
          %s271 = scalar_select %p270, %s269, 7
          %s272 = smul.addr %s271, 4
          %s273 = scalar_lea.vmem %s0, %s272
          %s274 = smul.u32 4, %s18
        $region44: #{tpu_custom_call.1} parent=39 // pred_fallthru
          _
      $region40: #{tpu_custom_call.1} parent=5 // pred_fallthru
        _
      %p275 = scmp.le.s32.totalorder 1, %s18
      %p276 = scmp.lt.s32.totalorder %s18, 3
      %p277 = pnand %p275, %p276
      %p278 = pneg %p277
      // Predicated region
      $region45: #{tpu_custom_call.1} parent=5 // pred_check
        _
      $region46: #{tpu_custom_call.1} parent=5 // pred_check_branch
        %280 = sbr.rel (%p277) target = $region48
      $region47: #{tpu_custom_call.1} parent=5 // pred_region
        %s281 = ssub.s32 %s18, 1
        // Predicated region
        $region49: #{tpu_custom_call.1} parent=47 // pred_check
          %p282 = pneg %p86
        $region50: #{tpu_custom_call.1} parent=47 // pred_check_branch
          %284 = sbr.rel (%p282) target = $region52
        $region51: #{tpu_custom_call.1} parent=47 // pred_region
          %286 = dma.done [#allocation3], 2048
        $region52: #{tpu_custom_call.1} parent=47 // pred_fallthru
          _
        // Predicated region
        $region53: #{tpu_custom_call.1} parent=47 // pred_check
          %p287 = pneg %p128
        $region54: #{tpu_custom_call.1} parent=47 // pred_check_branch
          %289 = sbr.rel (%p287) target = $region56
        $region55: #{tpu_custom_call.1} parent=47 // pred_region
          %291 = dma.done [#allocation6], 2048
        $region56: #{tpu_custom_call.1} parent=47 // pred_fallthru
          _
        // Predicated region
        $region57: #{tpu_custom_call.1} parent=47 // pred_check
          %p292 = pneg %p149
        $region58: #{tpu_custom_call.1} parent=47 // pred_check_branch
          %294 = sbr.rel (%p292) target = $region60
        $region59: #{tpu_custom_call.1} parent=47 // pred_region
          %296 = dma.done [#allocation6], 3072
        $region60: #{tpu_custom_call.1} parent=47 // pred_fallthru
          _
        %s297 = smul.u32 4, %s23
        %p298 = scmp.lt.s32.totalorder %s297, 7
        %s299 = scalar_select %p298, %s297, 7
        %s300 = smul.addr %s299, 4
        %s301 = scalar_lea.vmem %s0, %s300
        %p302 = pneg %p44
        %p303 = pneg %p41
        %p304 = pneg %p65
        %p305 = pneg %p62
        %p306 = pneg %p86
        %p307 = pneg %p83
        %p308 = pneg %p107
        %p309 = pneg %p104
        %p310 = pneg %p128
        %p311 = pneg %p125
        %p312 = pneg %p149
        %p313 = pneg %p146
        %p314 = pneg %p170
        %p315 = pneg %p167
        %p316 = pneg %p196
        %p317 = pneg %p193
        %s318 = sand.u32 %s183, 1
        %s319 = scalar_lea.sflag [#allocation4], %s318
        %s320 = sand.u32 %s183, 1
        %s321 = smul.addr %s320, 32
        %s322 = scalar_lea.vmem [#allocation8], %s321
        %s323 = smul.u32 4, %s23
        %p324 = scmp.lt.s32.totalorder %s323, 7
        %s325 = scalar_select %p324, %s323, 7
        %s326 = smul.addr %s325, 4
        %s327 = scalar_lea.vmem %s0, %s326
        %s328 = smul.u32 4, %s23
        %s329 = smul.u32 4, %s23
        %v330 = vld [vmem:[%s327] sm:$0xf]
        %v331 = vld [vmem:[%s327 + $0x4] sm:$0xf]
        %v332 = vld [vmem:[%s327 + $0x8] sm:$0xf]
        %v333 = vld [vmem:[%s327 + $0xc] sm:$0xf]
        %v334 = vunpack.c.l.bf16 %v330
        %v335 = vunpack.c.l.bf16 %v331
        %v336 = vunpack.c.l.bf16 %v332
        %v337 = vunpack.c.l.bf16 %v333
        %v338 = vld [vmem:[#allocation2] sm:$0xff]
        %v339 = vld [vmem:[#allocation2 + $0x8] sm:$0xff]
        %v340 = vld [vmem:[#allocation2 + $0x10] sm:$0xff]
        %v341 = vld [vmem:[#allocation2 + $0x18] sm:$0xff]
        %v342 = vld [vmem:[#allocation2 + $0x20] sm:$0xff]
        %v343 = vld [vmem:[#allocation2 + $0x28] sm:$0xff]
        %v344 = vld [vmem:[#allocation2 + $0x30] sm:$0xff]
        %v345 = vld [vmem:[#allocation2 + $0x38] sm:$0xff]
        %v346 = vld [vmem:[#allocation2 + $0x40] sm:$0xff]
        %v347 = vld [vmem:[#allocation2 + $0x48] sm:$0xff]
        %v348 = vld [vmem:[#allocation2 + $0x50] sm:$0xff]
        %v349 = vld [vmem:[#allocation2 + $0x58] sm:$0xff]
        %v350 = vld [vmem:[#allocation2 + $0x60] sm:$0xff]
        %v351 = vld [vmem:[#allocation2 + $0x68] sm:$0xff]
        %v352 = vld [vmem:[#allocation2 + $0x70] sm:$0xff]
        %v353 = vld [vmem:[#allocation2 + $0x78] sm:$0xff]
        %v354 = vld [vmem:[%s3] sm:$0x3]
        %v356 = vperm.slane %v354, 0
        %v357 = vperm.slane %v354, 1
        %v364 = vunpack.c.l.b16 %v330
        %v365 = vunpack.c.l.b16 %v331
        %v366 = vunpack.c.l.b16 %v332
        %v367 = vunpack.c.l.b16 %v333
        %v368 = vpack.c.b16 %v365, %v364
        %v369 = vpack.c.b16 %v367, %v366
        %v388 = vunpack.c.l.b16 %v338
        %v389 = vunpack.c.h.b16 %v338
        %v390 = vunpack.c.l.b16 %v339
        %v391 = vunpack.c.h.b16 %v339
        %v392 = vunpack.c.l.b16 %v340
        %v393 = vunpack.c.h.b16 %v340
        %v394 = vunpack.c.l.b16 %v341
        %v395 = vunpack.c.h.b16 %v341
        %v396 = vunpack.c.l.b16 %v342
        %v397 = vunpack.c.h.b16 %v342
        %v398 = vunpack.c.l.b16 %v343
        %v399 = vunpack.c.h.b16 %v343
        %v400 = vunpack.c.l.b16 %v344
        %v401 = vunpack.c.h.b16 %v344
        %v402 = vunpack.c.l.b16 %v345
        %v403 = vunpack.c.h.b16 %v345
        %v404 = vunpack.c.l.b16 %v346
        %v405 = vunpack.c.h.b16 %v346
        %v406 = vunpack.c.l.b16 %v347
        %v407 = vunpack.c.h.b16 %v347
        %v408 = vunpack.c.l.b16 %v348
        %v409 = vunpack.c.h.b16 %v348
        %v410 = vunpack.c.l.b16 %v349
        %v411 = vunpack.c.h.b16 %v349
        %v412 = vunpack.c.l.b16 %v350
        %v413 = vunpack.c.h.b16 %v350
        %v414 = vunpack.c.l.b16 %v351
        %v415 = vunpack.c.h.b16 %v351
        %v416 = vunpack.c.l.b16 %v352
        %v417 = vunpack.c.h.b16 %v352
        %v418 = vunpack.c.l.b16 %v353
        %v419 = vunpack.c.h.b16 %v353
        %v420 = vpack.c.b16 %v390, %v388
        %v421 = vpack.c.b16 %v391, %v389
        %v422 = vpack.c.b16 %v394, %v392
        %v423 = vpack.c.b16 %v395, %v393
        %v424 = vpack.c.b16 %v398, %v396
        %v425 = vpack.c.b16 %v399, %v397
        %v426 = vpack.c.b16 %v402, %v400
        %v427 = vpack.c.b16 %v403, %v401
        %v428 = vpack.c.b16 %v406, %v404
        %v429 = vpack.c.b16 %v407, %v405
        %v430 = vpack.c.b16 %v410, %v408
        %v431 = vpack.c.b16 %v411, %v409
        %v432 = vpack.c.b16 %v414, %v412
        %v433 = vpack.c.b16 %v415, %v413
        %v434 = vpack.c.b16 %v418, %v416
        %v435 = vpack.c.b16 %v419, %v417
        %452 = vmatpush.bf16.msra.mxu0 %v434
        %453 = vmatpush.bf16.msra.mxu0 %v432
        %454 = vmatpush.bf16.msra.mxu0 %v430
        %455 = vmatpush.bf16.msra.mxu0 %v428
        %456 = vmatpush.bf16.msra.mxu0 %v426
        %457 = vmatpush.bf16.msra.mxu0 %v424
        %458 = vmatpush.bf16.msra.mxu0 %v422
        %459 = vmatpush.bf16.msra.mxu0 %v420
        %460 = vmatmul.bf16.gmra.mxu0 %v368
        %v461 = vpop.f32.mrf.mxu0
        %v462 = vadd.f32 %v356, %v461
        %v463 = vpop.f32.mrf.mxu0
        %v464 = vadd.f32 %v356, %v463
        %465 = vmatmul.bf16.gmra.mxu0 %v369
        %v466 = vpop.f32.mrf.mxu0
        %v467 = vadd.f32 %v356, %v466
        %v468 = vpop.f32.mrf.mxu0
        %v469 = vadd.f32 %v356, %v468
        %470 = vdwg.mxu0
        %471 = vmatpush.bf16.msra.mxu0 %v435
        %472 = vmatpush.bf16.msra.mxu0 %v433
        %473 = vmatpush.bf16.msra.mxu0 %v431
        %474 = vmatpush.bf16.msra.mxu0 %v429
        %475 = vmatpush.bf16.msra.mxu0 %v427
        %476 = vmatpush.bf16.msra.mxu0 %v425
        %477 = vmatpush.bf16.msra.mxu0 %v423
        %478 = vmatpush.bf16.msra.mxu0 %v421
        %479 = vmatmul.bf16.gmra.mxu0 %v368
        %v480 = vpop.f32.mrf.mxu0
        %v481 = vadd.f32 %v357, %v480
        %v482 = vpop.f32.mrf.mxu0
        %v483 = vadd.f32 %v357, %v482
        %484 = vmatmul.bf16.gmra.mxu0 %v369
        %v485 = vpop.f32.mrf.mxu0
        %v486 = vadd.f32 %v357, %v485
        %v487 = vpop.f32.mrf.mxu0
        %v488 = vadd.f32 %v357, %v487
        %489 = vdwg.mxu0
        %v490 = vrot.slane %v334, 6
        %v491 = vrot.slane %v335, 6
        %v492 = vrot.slane %v336, 6
        %v493 = vrot.slane %v337, 6
        %v494 = vlaneseq
        %v495 = vshrl.u32 %v494, 7
        %vm496 = vcmp.lt.s32.totalorder %v495, 2
        %v497 = vsel %vm496, %v492, %v493
        %v498 = vsel %vm496, %v491, %v492
        %v499 = vsel %vm496, %v490, %v491
        %v500 = vsel %vm496, %v493, %v490
        %v501 = vpack.c.bf16 %v499, %v500
        %v502 = vpack.c.bf16 %v497, %v498
        %v503 = vld [vmem:[#allocation5] sm:$0xf]
        %v504 = vld [vmem:[#allocation5 + $0x4] sm:$0xf]
        %v505 = vld [vmem:[#allocation5 + $0x8] sm:$0xf]
        %v506 = vld [vmem:[#allocation5 + $0xc] sm:$0xf]
        %v507 = vld [vmem:[#allocation5 + $0x10] sm:$0xf]
        %v508 = vld [vmem:[#allocation5 + $0x14] sm:$0xf]
        %v509 = vld [vmem:[#allocation5 + $0x18] sm:$0xf]
        %v510 = vld [vmem:[#allocation5 + $0x1c] sm:$0xf]
        %v511 = vld [vmem:[#allocation5 + $0x20] sm:$0xf]
        %v512 = vld [vmem:[#allocation5 + $0x24] sm:$0xf]
        %v513 = vld [vmem:[#allocation5 + $0x28] sm:$0xf]
        %v514 = vld [vmem:[#allocation5 + $0x2c] sm:$0xf]
        %v515 = vld [vmem:[#allocation5 + $0x30] sm:$0xf]
        %v516 = vld [vmem:[#allocation5 + $0x34] sm:$0xf]
        %v517 = vld [vmem:[#allocation5 + $0x38] sm:$0xf]
        %v518 = vld [vmem:[#allocation5 + $0x3c] sm:$0xf]
        %v535 = vunpack.c.l.b16 %v503
        %v536 = vunpack.c.l.b16 %v504
        %v537 = vunpack.c.l.b16 %v505
        %v538 = vunpack.c.l.b16 %v506
        %v539 = vunpack.c.l.b16 %v507
        %v540 = vunpack.c.l.b16 %v508
        %v541 = vunpack.c.l.b16 %v509
        %v542 = vunpack.c.l.b16 %v510
        %v543 = vunpack.c.l.b16 %v511
        %v544 = vunpack.c.l.b16 %v512
        %v545 = vunpack.c.l.b16 %v513
        %v546 = vunpack.c.l.b16 %v514
        %v547 = vunpack.c.l.b16 %v515
        %v548 = vunpack.c.l.b16 %v516
        %v549 = vunpack.c.l.b16 %v517
        %v550 = vunpack.c.l.b16 %v518
        %v551 = vpack.c.b16 %v536, %v535
        %v552 = vpack.c.b16 %v538, %v537
        %v553 = vpack.c.b16 %v540, %v539
        %v554 = vpack.c.b16 %v542, %v541
        %v555 = vpack.c.b16 %v544, %v543
        %v556 = vpack.c.b16 %v546, %v545
        %v557 = vpack.c.b16 %v548, %v547
        %v558 = vpack.c.b16 %v550, %v549
        %567 = vmatpush.bf16.msra.mxu0 %v558
        %568 = vmatpush.bf16.msra.mxu0 %v557
        %569 = vmatpush.bf16.msra.mxu0 %v556
        %570 = vmatpush.bf16.msra.mxu0 %v555
        %571 = vmatpush.bf16.msra.mxu0 %v554
        %572 = vmatpush.bf16.msra.mxu0 %v553
        %573 = vmatpush.bf16.msra.mxu0 %v552
        %574 = vmatpush.bf16.msra.mxu0 %v551
        %575 = vmatmul.bf16.gmra.mxu0 %v501
        %v576 = vpop.f32.mrf.mxu0
        %v577 = vadd.f32 0.0, %v576
        %v578 = vpop.f32.mrf.mxu0
        %v579 = vadd.f32 0.0, %v578
        %580 = vmatmul.bf16.gmra.mxu0 %v502
        %v581 = vpop.f32.mrf.mxu0
        %v582 = vadd.f32 0.0, %v581
        %v583 = vpop.f32.mrf.mxu0
        %v584 = vadd.f32 0.0, %v583
        %585 = vdwg.mxu0
        %v586 = vadd.f32 %v462, %v577
        %v587 = vadd.f32 %v464, %v579
        %v588 = vadd.f32 %v467, %v582
        %v589 = vadd.f32 %v469, %v584
        %v590 = vrot.slane %v334, 7
        %v591 = vrot.slane %v335, 7
        %v592 = vrot.slane %v336, 7
        %v593 = vrot.slane %v337, 7
        %vm594 = vcmp.lt.s32.totalorder %v495, 1
        %v595 = vsel %vm594, %v592, %v593
        %v596 = vsel %vm594, %v591, %v592
        %v597 = vsel %vm594, %v590, %v591
        %v598 = vsel %vm594, %v593, %v590
        %v599 = vpack.c.bf16 %v597, %v598
        %v600 = vpack.c.bf16 %v595, %v596
        %s601 = scalar_lea.vmem [#allocation5], 64
        %v602 = vld [vmem:[%s601] sm:$0xf]
        %v603 = vld [vmem:[%s601 + $0x4] sm:$0xf]
        %v604 = vld [vmem:[%s601 + $0x8] sm:$0xf]
        %v605 = vld [vmem:[%s601 + $0xc] sm:$0xf]
        %v606 = vld [vmem:[%s601 + $0x10] sm:$0xf]
        %v607 = vld [vmem:[%s601 + $0x14] sm:$0xf]
        %v608 = vld [vmem:[%s601 + $0x18] sm:$0xf]
        %v609 = vld [vmem:[%s601 + $0x1c] sm:$0xf]
        %v610 = vld [vmem:[%s601 + $0x20] sm:$0xf]
        %v611 = vld [vmem:[%s601 + $0x24] sm:$0xf]
        %v612 = vld [vmem:[%s601 + $0x28] sm:$0xf]
        %v613 = vld [vmem:[%s601 + $0x2c] sm:$0xf]
        %v614 = vld [vmem:[%s601 + $0x30] sm:$0xf]
        %v615 = vld [vmem:[%s601 + $0x34] sm:$0xf]
        %v616 = vld [vmem:[%s601 + $0x38] sm:$0xf]
        %v617 = vld [vmem:[%s601 + $0x3c] sm:$0xf]
        %v634 = vunpack.c.l.b16 %v602
        %v635 = vunpack.c.l.b16 %v603
        %v636 = vunpack.c.l.b16 %v604
        %v637 = vunpack.c.l.b16 %v605
        %v638 = vunpack.c.l.b16 %v606
        %v639 = vunpack.c.l.b16 %v607
        %v640 = vunpack.c.l.b16 %v608
        %v641 = vunpack.c.l.b16 %v609
        %v642 = vunpack.c.l.b16 %v610
        %v643 = vunpack.c.l.b16 %v611
        %v644 = vunpack.c.l.b16 %v612
        %v645 = vunpack.c.l.b16 %v613
        %v646 = vunpack.c.l.b16 %v614
        %v647 = vunpack.c.l.b16 %v615
        %v648 = vunpack.c.l.b16 %v616
        %v649 = vunpack.c.l.b16 %v617
        %v650 = vpack.c.b16 %v635, %v634
        %v651 = vpack.c.b16 %v637, %v636
        %v652 = vpack.c.b16 %v639, %v638
        %v653 = vpack.c.b16 %v641, %v640
        %v654 = vpack.c.b16 %v643, %v642
        %v655 = vpack.c.b16 %v645, %v644
        %v656 = vpack.c.b16 %v647, %v646
        %v657 = vpack.c.b16 %v649, %v648
        %666 = vmatpush.bf16.msra.mxu0 %v657
        %667 = vmatpush.bf16.msra.mxu0 %v656
        %668 = vmatpush.bf16.msra.mxu0 %v655
        %669 = vmatpush.bf16.msra.mxu0 %v654
        %670 = vmatpush.bf16.msra.mxu0 %v653
        %671 = vmatpush.bf16.msra.mxu0 %v652
        %672 = vmatpush.bf16.msra.mxu0 %v651
        %673 = vmatpush.bf16.msra.mxu0 %v650
        %674 = vmatmul.bf16.gmra.mxu0 %v599
        %v675 = vpop.f32.mrf.mxu0
        %v676 = vadd.f32 0.0, %v675
        %v677 = vpop.f32.mrf.mxu0
        %v678 = vadd.f32 0.0, %v677
        %679 = vmatmul.bf16.gmra.mxu0 %v600
        %v680 = vpop.f32.mrf.mxu0
        %v681 = vadd.f32 0.0, %v680
        %v682 = vpop.f32.mrf.mxu0
        %v683 = vadd.f32 0.0, %v682
        %684 = vdwg.mxu0
        %v685 = vadd.f32 %v586, %v676
        %v686 = vadd.f32 %v587, %v678
        %v687 = vadd.f32 %v588, %v681
        %v688 = vadd.f32 %v589, %v683
        %v689 = vmax.f32 %v685, 0.0
        %v690 = vmax.f32 %v686, 0.0
        %v691 = vmax.f32 %v687, 0.0
        %v692 = vmax.f32 %v688, 0.0
        %v693 = vld [vmem:[%s1] sm:$0xff]
        %v694 = vld [vmem:[%s1 + $0x8] sm:$0xff]
        %v695 = vld [vmem:[%s1 + $0x10] sm:$0xff]
        %v696 = vld [vmem:[%s1 + $0x18] sm:$0xff]
        %vm697 = vcmp.ne.s32.totalorder %v693, 0
        %vm698 = vcmp.ne.s32.totalorder %v694, 0
        %vm699 = vcmp.ne.s32.totalorder %v695, 0
        %vm700 = vcmp.ne.s32.totalorder %v696, 0
        %v701 = vsel %vm697, 1, 0
        %v702 = vsel %vm698, 1, 0
        %v703 = vsel %vm699, 1, 0
        %v704 = vsel %vm700, 1, 0
        %v705 = vcvt.s32.f32 %v701
        %v706 = vcvt.s32.f32 %v702
        %v707 = vcvt.s32.f32 %v703
        %v708 = vcvt.s32.f32 %v704
        %710 = vset.pattern.permute.xlu0 0
        %711 = vperm.xlu0 %710, %v705
        %v712 = vpop.permute.xlu0 %711
        %715 = vset.pattern.permute.xlu0 0
        %716 = vperm.xlu0 %715, %v706
        %v717 = vpop.permute.xlu0 %716
        %720 = vset.pattern.permute.xlu0 0
        %721 = vperm.xlu0 %720, %v707
        %v722 = vpop.permute.xlu0 %721
        %725 = vset.pattern.permute.xlu0 0
        %726 = vperm.xlu0 %725, %v708
        %v727 = vpop.permute.xlu0 %726
        %v729 = vmul.f32 %v689, %v712
        %v730 = vmul.f32 %v690, %v717
        %v731 = vmul.f32 %v691, %v722
        %v732 = vmul.f32 %v692, %v727
        %v733 = vpack.c.bf16 %v730, %v729
        %v734 = vpack.c.bf16 %v732, %v731
        %s735 = scalar_lea.vmem [#allocation7], 128
        %v736 = vld [vmem:[%s735] sm:$0xf]
        %v737 = vld [vmem:[%s735 + $0x4] sm:$0xf]
        %v738 = vld [vmem:[%s735 + $0x8] sm:$0xf]
        %v739 = vld [vmem:[%s735 + $0xc] sm:$0xf]
        %v740 = vld [vmem:[%s735 + $0x10] sm:$0xf]
        %v741 = vld [vmem:[%s735 + $0x14] sm:$0xf]
        %v742 = vld [vmem:[%s735 + $0x18] sm:$0xf]
        %v743 = vld [vmem:[%s735 + $0x1c] sm:$0xf]
        %v744 = vld [vmem:[%s735 + $0x20] sm:$0xf]
        %v745 = vld [vmem:[%s735 + $0x24] sm:$0xf]
        %v746 = vld [vmem:[%s735 + $0x28] sm:$0xf]
        %v747 = vld [vmem:[%s735 + $0x2c] sm:$0xf]
        %v748 = vld [vmem:[%s735 + $0x30] sm:$0xf]
        %v749 = vld [vmem:[%s735 + $0x34] sm:$0xf]
        %v750 = vld [vmem:[%s735 + $0x38] sm:$0xf]
        %v751 = vld [vmem:[%s735 + $0x3c] sm:$0xf]
        %v752 = vld [vmem:[%s6] sm:$0x1]
        %v754 = vperm.slane %v752, 0
        %v772 = vunpack.c.l.b16 %v736
        %v773 = vunpack.c.l.b16 %v737
        %v774 = vunpack.c.l.b16 %v738
        %v775 = vunpack.c.l.b16 %v739
        %v776 = vunpack.c.l.b16 %v740
        %v777 = vunpack.c.l.b16 %v741
        %v778 = vunpack.c.l.b16 %v742
        %v779 = vunpack.c.l.b16 %v743
        %v780 = vunpack.c.l.b16 %v744
        %v781 = vunpack.c.l.b16 %v745
        %v782 = vunpack.c.l.b16 %v746
        %v783 = vunpack.c.l.b16 %v747
        %v784 = vunpack.c.l.b16 %v748
        %v785 = vunpack.c.l.b16 %v749
        %v786 = vunpack.c.l.b16 %v750
        %v787 = vunpack.c.l.b16 %v751
        %v788 = vpack.c.b16 %v773, %v772
        %v789 = vpack.c.b16 %v775, %v774
        %v790 = vpack.c.b16 %v777, %v776
        %v791 = vpack.c.b16 %v779, %v778
        %v792 = vpack.c.b16 %v781, %v780
        %v793 = vpack.c.b16 %v783, %v782
        %v794 = vpack.c.b16 %v785, %v784
        %v795 = vpack.c.b16 %v787, %v786
        %804 = vmatpush.bf16.msra.mxu0 %v795
        %805 = vmatpush.bf16.msra.mxu0 %v794
        %806 = vmatpush.bf16.msra.mxu0 %v793
        %807 = vmatpush.bf16.msra.mxu0 %v792
        %808 = vmatpush.bf16.msra.mxu0 %v791
        %809 = vmatpush.bf16.msra.mxu0 %v790
        %810 = vmatpush.bf16.msra.mxu0 %v789
        %811 = vmatpush.bf16.msra.mxu0 %v788
        %812 = vmatmul.bf16.gmra.mxu0 %v733
        %v813 = vpop.f32.mrf.mxu0
        %v814 = vadd.f32 %v754, %v813
        %v815 = vpop.f32.mrf.mxu0
        %v816 = vadd.f32 %v754, %v815
        %817 = vmatmul.bf16.gmra.mxu0 %v734
        %v818 = vpop.f32.mrf.mxu0
        %v819 = vadd.f32 %v754, %v818
        %v820 = vpop.f32.mrf.mxu0
        %v821 = vadd.f32 %v754, %v820
        %822 = vdwg.mxu0
        %v823 = vrot.slane %v729, 6
        %v824 = vrot.slane %v730, 6
        %v825 = vrot.slane %v731, 6
        %v826 = vrot.slane %v732, 6
        %v827 = vsel %vm496, %v825, %v826
        %v828 = vsel %vm496, %v824, %v825
        %v829 = vsel %vm496, %v823, %v824
        %v830 = vsel %vm496, %v826, %v823
        %v831 = vpack.c.bf16 %v829, %v830
        %v832 = vpack.c.bf16 %v827, %v828
        %v833 = vld [vmem:[#allocation7] sm:$0xf]
        %v834 = vld [vmem:[#allocation7 + $0x4] sm:$0xf]
        %v835 = vld [vmem:[#allocation7 + $0x8] sm:$0xf]
        %v836 = vld [vmem:[#allocation7 + $0xc] sm:$0xf]
        %v837 = vld [vmem:[#allocation7 + $0x10] sm:$0xf]
        %v838 = vld [vmem:[#allocation7 + $0x14] sm:$0xf]
        %v839 = vld [vmem:[#allocation7 + $0x18] sm:$0xf]
        %v840 = vld [vmem:[#allocation7 + $0x1c] sm:$0xf]
        %v841 = vld [vmem:[#allocation7 + $0x20] sm:$0xf]
        %v842 = vld [vmem:[#allocation7 + $0x24] sm:$0xf]
        %v843 = vld [vmem:[#allocation7 + $0x28] sm:$0xf]
        %v844 = vld [vmem:[#allocation7 + $0x2c] sm:$0xf]
        %v845 = vld [vmem:[#allocation7 + $0x30] sm:$0xf]
        %v846 = vld [vmem:[#allocation7 + $0x34] sm:$0xf]
        %v847 = vld [vmem:[#allocation7 + $0x38] sm:$0xf]
        %v848 = vld [vmem:[#allocation7 + $0x3c] sm:$0xf]
        %v865 = vunpack.c.l.b16 %v833
        %v866 = vunpack.c.l.b16 %v834
        %v867 = vunpack.c.l.b16 %v835
        %v868 = vunpack.c.l.b16 %v836
        %v869 = vunpack.c.l.b16 %v837
        %v870 = vunpack.c.l.b16 %v838
        %v871 = vunpack.c.l.b16 %v839
        %v872 = vunpack.c.l.b16 %v840
        %v873 = vunpack.c.l.b16 %v841
        %v874 = vunpack.c.l.b16 %v842
        %v875 = vunpack.c.l.b16 %v843
        %v876 = vunpack.c.l.b16 %v844
        %v877 = vunpack.c.l.b16 %v845
        %v878 = vunpack.c.l.b16 %v846
        %v879 = vunpack.c.l.b16 %v847
        %v880 = vunpack.c.l.b16 %v848
        %v881 = vpack.c.b16 %v866, %v865
        %v882 = vpack.c.b16 %v868, %v867
        %v883 = vpack.c.b16 %v870, %v869
        %v884 = vpack.c.b16 %v872, %v871
        %v885 = vpack.c.b16 %v874, %v873
        %v886 = vpack.c.b16 %v876, %v875
        %v887 = vpack.c.b16 %v878, %v877
        %v888 = vpack.c.b16 %v880, %v879
        %897 = vmatpush.bf16.msra.mxu0 %v888
        %898 = vmatpush.bf16.msra.mxu0 %v887
        %899 = vmatpush.bf16.msra.mxu0 %v886
        %900 = vmatpush.bf16.msra.mxu0 %v885
        %901 = vmatpush.bf16.msra.mxu0 %v884
        %902 = vmatpush.bf16.msra.mxu0 %v883
        %903 = vmatpush.bf16.msra.mxu0 %v882
        %904 = vmatpush.bf16.msra.mxu0 %v881
        %905 = vmatmul.bf16.gmra.mxu0 %v831
        %v906 = vpop.f32.mrf.mxu0
        %v907 = vadd.f32 0.0, %v906
        %v908 = vpop.f32.mrf.mxu0
        %v909 = vadd.f32 0.0, %v908
        %910 = vmatmul.bf16.gmra.mxu0 %v832
        %v911 = vpop.f32.mrf.mxu0
        %v912 = vadd.f32 0.0, %v911
        %v913 = vpop.f32.mrf.mxu0
        %v914 = vadd.f32 0.0, %v913
        %915 = vdwg.mxu0
        %v916 = vadd.f32 %v814, %v907
        %v917 = vadd.f32 %v816, %v909
        %v918 = vadd.f32 %v819, %v912
        %v919 = vadd.f32 %v821, %v914
        %v920 = vrot.slane %v729, 7
        %v921 = vrot.slane %v730, 7
        %v922 = vrot.slane %v731, 7
        %v923 = vrot.slane %v732, 7
        %v924 = vsel %vm594, %v922, %v923
        %v925 = vsel %vm594, %v921, %v922
        %v926 = vsel %vm594, %v920, %v921
        %v927 = vsel %vm594, %v923, %v920
        %v928 = vpack.c.bf16 %v926, %v927
        %v929 = vpack.c.bf16 %v924, %v925
        %s930 = scalar_lea.vmem [#allocation7], 64
        %v931 = vld [vmem:[%s930] sm:$0xf]
        %v932 = vld [vmem:[%s930 + $0x4] sm:$0xf]
        %v933 = vld [vmem:[%s930 + $0x8] sm:$0xf]
        %v934 = vld [vmem:[%s930 + $0xc] sm:$0xf]
        %v935 = vld [vmem:[%s930 + $0x10] sm:$0xf]
        %v936 = vld [vmem:[%s930 + $0x14] sm:$0xf]
        %v937 = vld [vmem:[%s930 + $0x18] sm:$0xf]
        %v938 = vld [vmem:[%s930 + $0x1c] sm:$0xf]
        %v939 = vld [vmem:[%s930 + $0x20] sm:$0xf]
        %v940 = vld [vmem:[%s930 + $0x24] sm:$0xf]
        %v941 = vld [vmem:[%s930 + $0x28] sm:$0xf]
        %v942 = vld [vmem:[%s930 + $0x2c] sm:$0xf]
        %v943 = vld [vmem:[%s930 + $0x30] sm:$0xf]
        %v944 = vld [vmem:[%s930 + $0x34] sm:$0xf]
        %v945 = vld [vmem:[%s930 + $0x38] sm:$0xf]
        %v946 = vld [vmem:[%s930 + $0x3c] sm:$0xf]
        %v963 = vunpack.c.l.b16 %v931
        %v964 = vunpack.c.l.b16 %v932
        %v965 = vunpack.c.l.b16 %v933
        %v966 = vunpack.c.l.b16 %v934
        %v967 = vunpack.c.l.b16 %v935
        %v968 = vunpack.c.l.b16 %v936
        %v969 = vunpack.c.l.b16 %v937
        %v970 = vunpack.c.l.b16 %v938
        %v971 = vunpack.c.l.b16 %v939
        %v972 = vunpack.c.l.b16 %v940
        %v973 = vunpack.c.l.b16 %v941
        %v974 = vunpack.c.l.b16 %v942
        %v975 = vunpack.c.l.b16 %v943
        %v976 = vunpack.c.l.b16 %v944
        %v977 = vunpack.c.l.b16 %v945
        %v978 = vunpack.c.l.b16 %v946
        %v979 = vpack.c.b16 %v964, %v963
        %v980 = vpack.c.b16 %v966, %v965
        %v981 = vpack.c.b16 %v968, %v967
        %v982 = vpack.c.b16 %v970, %v969
        %v983 = vpack.c.b16 %v972, %v971
        %v984 = vpack.c.b16 %v974, %v973
        %v985 = vpack.c.b16 %v976, %v975
        %v986 = vpack.c.b16 %v978, %v977
        %995 = vmatpush.bf16.msra.mxu0 %v986
        %996 = vmatpush.bf16.msra.mxu0 %v985
        %997 = vmatpush.bf16.msra.mxu0 %v984
        %998 = vmatpush.bf16.msra.mxu0 %v983
        %999 = vmatpush.bf16.msra.mxu0 %v982
        %1000 = vmatpush.bf16.msra.mxu0 %v981
        %1001 = vmatpush.bf16.msra.mxu0 %v980
        %1002 = vmatpush.bf16.msra.mxu0 %v979
        %1003 = vmatmul.bf16.gmra.mxu0 %v928
        %v1004 = vpop.f32.mrf.mxu0
        %v1005 = vadd.f32 0.0, %v1004
        %v1006 = vpop.f32.mrf.mxu0
        %v1007 = vadd.f32 0.0, %v1006
        %1008 = vmatmul.bf16.gmra.mxu0 %v929
        %v1009 = vpop.f32.mrf.mxu0
        %v1010 = vadd.f32 0.0, %v1009
        %v1011 = vpop.f32.mrf.mxu0
        %v1012 = vadd.f32 0.0, %v1011
        %1013 = vdwg.mxu0
        %v1014 = vadd.f32 %v916, %v1005
        %v1015 = vadd.f32 %v917, %v1007
        %v1016 = vadd.f32 %v918, %v1010
        %v1017 = vadd.f32 %v919, %v1012
        %v1018 = vmax.f32 %v1014, 0.0
        %v1019 = vmax.f32 %v1015, 0.0
        %v1020 = vmax.f32 %v1016, 0.0
        %v1021 = vmax.f32 %v1017, 0.0
        %v1022 = vadd.f32 %v1018, %v481
        %v1023 = vadd.f32 %v1019, %v483
        %v1024 = vadd.f32 %v1020, %v486
        %v1025 = vadd.f32 %v1021, %v488
        %v1026 = vmax.f32 %v1022, 0.0
        %v1027 = vmax.f32 %v1023, 0.0
        %v1028 = vmax.f32 %v1024, 0.0
        %v1029 = vmax.f32 %v1025, 0.0
        %1030 = vst [vmem:[%s322] sm:$0xff] %v1026
        %1031 = vst [vmem:[%s322 + $0x8] sm:$0xff] %v1027
        %1032 = vst [vmem:[%s322 + $0x10] sm:$0xff] %v1028
        %1033 = vst [vmem:[%s322 + $0x18] sm:$0xff] %v1029
        %s1034 = sand.u32 %s183, 1
        %s1035 = scalar_lea.sflag [#allocation4], %s1034
        %s1036 = sand.u32 %s183, 1
        %s1037 = smul.addr %s1036, 32
        %s1038 = scalar_lea.vmem [#allocation8], %s1037
        // Predicated region
        $region61: #{tpu_custom_call.1} parent=47 // pred_check
          %p1039 = pneg %p193
        $region62: #{tpu_custom_call.1} parent=47 // pred_check_branch
          %1041 = sbr.rel (%p1039) target = $region64
        $region63: #{tpu_custom_call.1} parent=47 // pred_region
          %s1042 = smul.u32 4, %s23
          %1044 = vsyncadd %s1035, 0
          %s1045 = smul.addr %s1042, 8
          %s1046 = scalar_lea.hbm %s7, %s1045
          %s1047 = sshll.u32 %s1038, 4
          %s1048 = int_to_ptr.vmem [resolvable:$true] %s1047
          %s1049 = sshll.u32 %s1046, 4
          %s1050 = int_to_ptr.hbm [resolvable:$true] %s1049
          %1055 = dma.vmem_to_hbm [thread:$0]  %s1048, 512, %s1050, %s1035, 128, 128, 8
        $region64: #{tpu_custom_call.1} parent=47 // pred_fallthru
          _
      $region48: #{tpu_custom_call.1} parent=5 // pred_fallthru
        _
      %p1056 = scmp.le.s32.totalorder 2, %s18
      // Predicated region
      $region65: #{tpu_custom_call.1} parent=5 // pred_check
        %p1057 = pneg %p1056
      $region66: #{tpu_custom_call.1} parent=5 // pred_check_branch
        %1059 = sbr.rel (%p1057) target = $region68
      $region67: #{tpu_custom_call.1} parent=5 // pred_region
        %s1060 = ssub.s32 %s18, 2
        // Predicated region
        $region69: #{tpu_custom_call.1} parent=67 // pred_check
          %p1061 = pneg %p199
        $region70: #{tpu_custom_call.1} parent=67 // pred_check_branch
          %1063 = sbr.rel (%p1061) target = $region72
        $region71: #{tpu_custom_call.1} parent=67 // pred_region
          %s1064 = sand.u32 %s184, 1
          %s1065 = scalar_lea.sflag [#allocation4], %s1064
          %s1066 = sand.u32 %s184, 1
          %s1067 = smul.addr %s1066, 32
          %s1068 = scalar_lea.vmem [#allocation8], %s1067
          %1070 = dma.done %s1065, 512
        $region72: #{tpu_custom_call.1} parent=67 // pred_fallthru
          _
      $region68: #{tpu_custom_call.1} parent=5 // pred_fallthru
        _
    $region6: #{tpu_custom_call.1} parent=1 // loop_footer
      %s22 = sadd.s32 1, %s18
    $region7: #{tpu_custom_call.1} parent=1 // loop_footer_branch
      %17 = sbr.rel target = $region3
    $region8: #{tpu_custom_call.1} parent=1 // loop_exit
      _
    %1071 = vsyncpa [#allocation3], 1
    %s1072 = scalar_lea.sflag [#allocation3], 1
    %1073 = vsyncpa %s1072, 1
    %1074 = vsyncpa [#allocation6], 1
    %1075 = vsyncpa [#allocation4], 1
    %s1076 = scalar_lea.sflag [#allocation4], 1
    %1077 = vsyncpa %s1076, 1

</llo_original>
